<compile_context>
chip_gen: v5e
topology: v5e:2x2
jax: 0.10.0
libtpu: 0.0.40
codegen_flags: <defaults>
</compile_context>

<pallas_src>
import jax
import jax.numpy as jnp
from jax.experimental import pallas as pl
from jax.experimental.pallas import tpu as pltpu


def _copy_kernel(x_ref, o_ref):
    # Pure streaming copy of the current VMEM tile (HBM-bandwidth bound).
    o_ref[...] = x_ref[...]


def _pick_2d_layout(total: int):
    """Lane-dense (lead, last) factorization of `total` elements.

    Primary path: largest multiple-of-128 divisor (trying wide lanes first)
    that still leaves >= 8 sublane rows; otherwise the largest multiple-of-128
    divisor at all.  Fallback (total not divisible by 128): widest divisor
    <= 8192 as the lane dim, preferring >= 8 rows, so masking is confined to
    the tail vreg of each row instead of every store."""
    candidates = (4096, 2048, 1024, 512, 384, 256, 128)
    best = None
    for last in candidates:
        if total % last == 0:
            if best is None:
                best = last
            if total // last >= 8:
                return total // last, last
    if best is not None:
        return total // best, best

    # No multiple-of-128 divisor exists.  Enumerate divisors <= 8192.
    divs = set()
    d = 1
    while d * d <= total:
        if total % d == 0:
            if d <= 8192:
                divs.add(d)
            q = total // d
            if q <= 8192:
                divs.add(q)
        d += 1
    for c in sorted(divs, reverse=True):
        if total // c >= 8:
            return total // c, c
    c = max(divs)
    return total // c, c


def _chip_tile_budget():
    """Per-generation (tile_bytes_target, vmem_limit_bytes_or_None).

    In+out double buffers cost ~4x the tile, so the budget is chosen to fit
    each generation's scoped VMEM: v5e (16 MiB default, ~0.8 TB/s HBM) gets
    ~3 MiB tiles; v6e/default ~4 MiB; v7x (3.2 TB/s HBM, 64 MiB physical VMEM)
    gets ~8 MiB tiles with the scoped limit raised to ~44 MiB."""
    kind = ""
    try:
        kind = jax.devices()[0].device_kind.lower()
    except Exception:
        pass
    if "v5e" in kind or "v5 lite" in kind or "v5lite" in kind:
        return 3 << 20, None            # stay under the 16 MiB default limit
    if "7x" in kind or "v7" in kind:
        return 8 << 20, 44 << 20        # 4 * 8 MiB buffers + headroom
    return 4 << 20, 24 << 20            # v6e and other generations


def _pick_row_tile(lead: int, row_bytes: int, tile_bytes_target: int) -> int:
    """Row-tile height from the byte budget (multiple of 8, or full extent)."""
    rows = max(1, tile_bytes_target // max(1, row_bytes))
    rows = max(8, (rows // 8) * 8)
    tm = lead if rows >= lead else rows
    # Ensure >= 2 grid steps for v7x megacore when there is meaningful work
    # (harmless on single-TensorCore v5e/v6e).
    if tm == lead and lead > 8 and row_bytes * lead > (1 << 16):
        half = (lead + 1) // 2
        half = ((half + 7) // 8) * 8
        if half < lead:
            tm = half
    return tm


def unseq(x: jax.Array, *, donate_input: bool = False) -> jax.Array:
    """Equivalent of torch.unsqueeze(x, 2); data movement done in Pallas.

    Set donate_input=True only when the caller donates x (e.g. via
    jax.jit(..., donate_argnums=0)); otherwise aliasing would force XLA to
    insert a defensive copy and double HBM traffic."""
    assert x.ndim >= 2, "unsqueeze(x, 2) requires ndim >= 2 (as in PyTorch)"
    out_shape = x.shape[:2] + (1,) + x.shape[2:]

    total = x.size
    if total == 0:
        # Empty tensor: metadata-only reshape.
        return x.reshape(out_shape)

    itemsize = jnp.dtype(x.dtype).itemsize
    lead, last = _pick_2d_layout(total)
    tile_bytes, vmem_limit = _chip_tile_budget()
    tm = _pick_row_tile(lead, last * itemsize, tile_bytes)
    grid = (pl.cdiv(lead, tm),)

    x2d = x.reshape(lead, last)

    extra_kwargs = {}
    if donate_input:
        extra_kwargs["input_output_aliases"] = {0: 0}

    cp_kwargs = dict(dimension_semantics=("parallel",))
    if vmem_limit is not None:
        cp_kwargs["vmem_limit_bytes"] = vmem_limit

    y2d = pl.pallas_call(
        _copy_kernel,
        out_shape=jax.ShapeDtypeStruct((lead, last), x.dtype),
        grid=grid,
        in_specs=[pl.BlockSpec((tm, last), lambda i: (i, 0))],
        out_specs=pl.BlockSpec((tm, last), lambda i: (i, 0)),
        compiler_params=pltpu.CompilerParams(**cp_kwargs),
        cost_estimate=pl.CostEstimate(
            flops=0,
            transcendentals=0,
            bytes_accessed=2 * total * itemsize,
        ),
        **extra_kwargs,
    )(x2d)

    # Insert the new size-1 axis at position 2 (zero-cost metadata reshape).
    return y2d.reshape(out_shape)


if __name__ == "__main__":
    key = jax.random.PRNGKey(0)
    # Small NCHW input consistent with the module's forward.
    x = jax.random.normal(key, (2, 4, 16, 16), dtype=jnp.float32)

    ref = jnp.expand_dims(x, 2)

    unseq_jit = jax.jit(unseq)
    y = unseq_jit(x)
    jax.block_until_ready(y)

    assert y.shape == (2, 4, 1, 16, 16), y.shape
    assert y.dtype == x.dtype
    assert bool(jnp.all(y == ref))

    print("KERNEL_OK")
</pallas_src>

<mosaic_0001>
module attributes {stable_mosaic.version = 11 : i64} {
  func.func @_copy_kernel(%arg0: i32, %arg1: memref<8x256xf32, #tpu.memory_space<vmem>>, %arg2: memref<8x256xf32, #tpu.memory_space<vmem>>) attributes {dimension_semantics = [#tpu.dimension_semantics<parallel>], iteration_bounds = array<i64: 1>, scalar_prefetch = 0 : i64, scratch_operands = 0 : i64, tpu.core_type = #tpu.core_type<tc>, window_params = [{transform_indices = @transform_0, window_bounds = array<i64: 8, 256>}, {transform_indices = @transform_1, window_bounds = array<i64: 8, 256>}]} {
    %c0 = arith.constant 0 : index
    %c0_0 = arith.constant 0 : index
    %0 = vector.load %arg1[%c0, %c0_0] : memref<8x256xf32, #tpu.memory_space<vmem>>, vector<8x256xf32>
    %c0_1 = arith.constant 0 : index
    %c0_2 = arith.constant 0 : index
    %1 = vector.load %arg2[%c0_1, %c0_2] : memref<8x256xf32, #tpu.memory_space<vmem>>, vector<8x256xf32>
    tpu.vector_store %arg2[%c0_1, %c0_2], %0 {strides = array<i32>} : memref<8x256xf32, #tpu.memory_space<vmem>>, vector<8x256xf32>,
    return
  }
  func.func @transform_0(%arg0: i32) -> (i32, i32) {
    %c0_i32 = arith.constant 0 : i32
    %c0_i32_0 = arith.constant 0 : i32
    return %arg0, %c0_i32 : i32, i32
  }
  func.func @transform_1(%arg0: i32) -> (i32, i32) {
    %c0_i32 = arith.constant 0 : i32
    %c0_i32_0 = arith.constant 0 : i32
    return %arg0, %c0_i32 : i32, i32
  }
}

</mosaic_0001>

<llo_original>
// kernel: unseq.1
$region0: #{unseq.1}
  #allocation0 [shape = 'u32[]', space=smem, size = 0x4, offset = 0x4, fixed_abs, tag = 'smem constant byte address 0x4 - core index']
  #allocation1 [shape = 'u32[72,128]{1,0:T(1,128)}', space=vmem, size = 0x9000, scoped, tag = 'internal scratch']
  %s0 = inlined_call_operand.vmem [shape: f32[8,256], index: 0, kind: input, shape index: {}]
  %s1 = inlined_call_operand.vmem [shape: f32[8,256], index: 1, kind: output, shape index: {}]
  %s2 = sld [smem:[#allocation0]]
  $region14: #{unseq.1} parent=0
    _
  %s4 = ssub.s32 1, %s2
  %s5 = scalar_select 0, %s4, %s2
  // Predicated region
  $region2: #{unseq.1} parent=0 // pred_check
    _
  $region3: #{unseq.1} parent=0 // pred_check_branch
    %7 = sbr.rel (0) target = $region5
  $region4: #{unseq.1} parent=0 // pred_region
    _
  $region5: #{unseq.1} parent=0 // pred_fallthru
    _
  %v8 = vld [vmem:[%s0] sm:$0xff]
  %v9 = vld [vmem:[%s0 + $0x8] sm:$0xff]
  %10 = vst [vmem:[%s1] sm:$0xff] %v8
  %11 = vst [vmem:[%s1 + $0x8] sm:$0xff] %v9
  // Predicated region
  $region6: #{unseq.1} parent=0 // pred_check
    _
  $region7: #{unseq.1} parent=0 // pred_check_branch
    %13 = sbr.rel (0) target = $region9
  $region8: #{unseq.1} parent=0 // pred_region
    _
  $region9: #{unseq.1} parent=0 // pred_fallthru
    _
  // Predicated region
  $region10: #{unseq.1} parent=0 // pred_check
    _
  $region11: #{unseq.1} parent=0 // pred_check_branch
    %15 = sbr.rel (0) target = $region13
  $region12: #{unseq.1} parent=0 // pred_region
    _
  $region13: #{unseq.1} parent=0 // pred_fallthru
    _

</llo_original>
